<compile_context>
chip_gen: v7x
topology: tpu7x:2x2x1
jax: 0.10.0
libtpu: 0.0.40
codegen_flags: <defaults>
</compile_context>

<pallas_src>
import functools

import jax
import jax.numpy as jnp
from jax import lax
from jax.experimental import pallas as pl
from jax.experimental.pallas import tpu as pltpu


def _log_ratio_kernel(x_ref, z_ref, out_ref, sq_in_acc, sq_lat_acc, *,
                      eps_in, eps_lat, d_in, d_lat, tile_in, tile_lat,
                      g_in, g_lat):
    k = pl.program_id(0)
    n = x_ref.shape[0]
    m = n - 1
    num_steps = max(g_in, g_lat)

    @pl.when(k == 0)
    def _init():
        sq_in_acc[...] = jnp.zeros_like(sq_in_acc)
        sq_lat_acc[...] = jnp.zeros_like(sq_lat_acc)

    def _accumulate(ref, acc, d, tile, g):
        def body():
            v = ref[...].astype(jnp.float32)          # (n, tile), upcast in VMEM
            dv = v - v[0:1, :]                        # anchor-aligned diff
            if d % tile != 0:
                # Mask padded lanes of the ragged last block (select, so any
                # garbage/NaN padding cannot leak into the sum).
                col = k * tile + lax.broadcasted_iota(jnp.int32, dv.shape, 1)
                dv = jnp.where(col < d, dv, 0.0)
            acc[...] += jnp.sum(dv * dv, axis=-1, keepdims=True)   # (n, 1)

        if g == num_steps:            # static: every step has a valid block
            body()
        else:                         # fewer blocks than grid steps: gate off
            pl.when(k < g)(body)

    _accumulate(x_ref, sq_in_acc, d_in, tile_in, g_in)
    _accumulate(z_ref, sq_lat_acc, d_lat, tile_lat, g_lat)

    @pl.when(k == num_steps - 1)
    def _finalize():
        ld = jnp.log(jnp.sqrt(sq_in_acc[...] + eps_in) + 1e-6)   # (n, 1)
        lg = jnp.log(jnp.sqrt(sq_lat_acc[...] + eps_lat) + 1e-6)
        c = ld - lg                                              # (n, 1)
        # Drop the anchor row (index 0) from mean / sum-of-squares.
        row = lax.broadcasted_iota(jnp.int32, (n, 1), 0)
        mask = (row >= 1).astype(jnp.float32)
        cm = c * mask
        mean_c = jnp.sum(cm, axis=0, keepdims=True) * (1.0 / m)
        centered = (c - mean_c) * mask
        ssq = jnp.sum(centered * centered, axis=0, keepdims=True)
        # loss = 2 * sum_i (c_i - mean)^2 / (m - 1)
        out_ref[...] = ssq * (2.0 / (m - 1))


def _pick_tile(d, n_rows, max_tile):
    """Lane-tile along D: full extent if it fits, else a 128-multiple sized so
    one (n_rows, tile) f32 buffer stays under ~3 MiB (safe with 2 inputs x 2
    pipeline buffers on every chip, incl. v7x's 64 MiB VMEM)."""
    cap = max(128, ((3 << 20) // (4 * n_rows)) // 128 * 128)
    tile = min(max_tile, cap)
    if d <= tile:
        return d
    return tile


def log_ratio_loss(input_arr, latent_arr, *, max_tile=2048):
    """Pallas implementation of LogRatioLoss.forward(input, latent)."""
    n = input_arr.shape[0]
    assert latent_arr.shape[0] == n
    assert n >= 3, "need >= 2 positives; N == 2 is degenerate (NaN in PyTorch too)"

    # PyTorch L2dist eps = 1e-4 / a_input.size(0)  (first feature dim, pre-flatten)
    eps_in = 1e-4 / input_arr.shape[1]
    eps_lat = 1e-4 / latent_arr.shape[1]

    # Keep the native dtype (bf16 stays bf16 on the wire); flatten trailing dims.
    x = input_arr.reshape(n, -1)
    z = latent_arr.reshape(n, -1)
    d_in, d_lat = x.shape[1], z.shape[1]

    tile_in = _pick_tile(d_in, n, max_tile)
    tile_lat = _pick_tile(d_lat, n, max_tile)
    g_in = pl.cdiv(d_in, tile_in)
    g_lat = pl.cdiv(d_lat, tile_lat)
    grid_len = max(g_in, g_lat)

    def idx_map(g):
        if g == grid_len:
            return lambda k: (0, k)
        # Fewer blocks than grid steps: clamp to the last valid block (the
        # repeated index is not re-DMA'd and the compute is gated off).
        return lambda k: (0, jnp.minimum(k, g - 1))

    kernel = functools.partial(
        _log_ratio_kernel,
        eps_in=eps_in, eps_lat=eps_lat,
        d_in=d_in, d_lat=d_lat,
        tile_in=tile_in, tile_lat=tile_lat,
        g_in=g_in, g_lat=g_lat)

    cost = pl.CostEstimate(
        flops=4 * n * (d_in + d_lat),
        transcendentals=4 * n,
        bytes_accessed=(x.size * x.dtype.itemsize
                        + z.size * z.dtype.itemsize + 4))

    out = pl.pallas_call(
        kernel,
        out_shape=jax.ShapeDtypeStruct((1, 1), jnp.float32),
        grid_spec=pltpu.PrefetchScalarGridSpec(
            num_scalar_prefetch=0,
            grid=(grid_len,),
            in_specs=[
                pl.BlockSpec((n, tile_in), idx_map(g_in)),
                pl.BlockSpec((n, tile_lat), idx_map(g_lat)),
            ],
            out_specs=pl.BlockSpec((1, 1), lambda k: (0, 0)),
            scratch_shapes=[
                pltpu.VMEM((n, 1), jnp.float32),
                pltpu.VMEM((n, 1), jnp.float32),
            ],
        ),
        compiler_params=pltpu.CompilerParams(
            dimension_semantics=("arbitrary",),
            vmem_limit_bytes=32 * 1024 * 1024),
        cost_estimate=cost,
    )(x, z)
    return out[0, 0]


def _ref_loss(inp, lat):
    """Pure-JAX reference mirroring the PyTorch code (O(m^2)), for validation."""
    m = inp.shape[0] - 1

    def pdist(a, p, first_dim):
        eps = 1e-4 / first_dim
        diff = jnp.abs(a[None] - p).reshape(m, -1).astype(jnp.float32)
        return jnp.sqrt(jnp.sum(diff ** 2, axis=-1) + eps)

    d_i = pdist(inp[0], inp[1:], inp.shape[1])
    d_l = pdist(lat[0], lat[1:], lat.shape[1])
    ld = jnp.log(d_i + 1e-6)
    lg = jnp.log(d_l + 1e-6)
    dl = ld[:, None] - ld[None, :]
    dg = lg[:, None] - lg[None, :]
    idx = jnp.arange(1, m + 1)
    indc = (idx[:, None] < idx[None, :]).astype(jnp.float32)
    wgt = indc / indc.sum()
    return jnp.sum((dl - dg) ** 2 * wgt)


if __name__ == "__main__":
    key = jax.random.PRNGKey(0)
    k1, k2, k3, k4 = jax.random.split(key, 4)

    # Test 1: small demo shapes (1 anchor + 8 positives), single-block path.
    N, D_IN, D_LAT = 9, 32, 16
    inp = jax.random.normal(k1, (N, D_IN), dtype=jnp.float32)
    lat = jax.random.normal(k2, (N, D_LAT), dtype=jnp.float32)
    loss = jax.block_until_ready(log_ratio_loss(inp, lat))
    ref = jax.block_until_ready(_ref_loss(inp, lat))
    assert jnp.isfinite(loss), loss
    assert jnp.allclose(loss, ref, rtol=1e-3, atol=1e-5), (loss, ref)

    # Test 2: exercise the gridded/pipelined path (multiple D-blocks, ragged
    # last blocks, different block counts per input -> clamped index_map).
    N2, D_IN2, D_LAT2 = 9, 320, 200
    inp2 = jax.random.normal(k3, (N2, D_IN2), dtype=jnp.float32)
    lat2 = jax.random.normal(k4, (N2, D_LAT2), dtype=jnp.float32)
    loss2 = jax.block_until_ready(log_ratio_loss(inp2, lat2, max_tile=128))
    ref2 = jax.block_until_ready(_ref_loss(inp2, lat2))
    assert jnp.isfinite(loss2), loss2
    assert jnp.allclose(loss2, ref2, rtol=1e-3, atol=1e-5), (loss2, ref2)

    print("KERNEL_OK")
</pallas_src>

<mosaic_0001>
module attributes {stable_mosaic.version = 11 : i64} {
  func.func @_log_ratio_kernel(%arg0: i32, %arg1: memref<9x32xf32, #tpu.memory_space<vmem>>, %arg2: memref<9x16xf32, #tpu.memory_space<vmem>>, %arg3: memref<1x1xf32, #tpu.memory_space<vmem>>, %arg4: memref<9x1xf32, #tpu.memory_space<vmem>>, %arg5: memref<9x1xf32, #tpu.memory_space<vmem>>) attributes {dimension_semantics = [#tpu.dimension_semantics<arbitrary>], iteration_bounds = array<i64: 1>, scalar_prefetch = 0 : i64, scratch_operands = 2 : i64, tpu.core_type = #tpu.core_type<tc>, window_params = [{transform_indices = @transform_0, window_bounds = array<i64: 9, 32>}, {transform_indices = @transform_1, window_bounds = array<i64: 9, 16>}, {pipeline_mode = #tpu.pipeline_mode<synchronous>, transform_indices = @transform_2, window_bounds = array<i64: 1, 1>}]} {
    %c0_i32 = arith.constant 0 : i32
    %0 = arith.cmpi eq, %arg0, %c0_i32 : i32
    %1 = arith.extui %0 : i1 to i32
    %c0_i32_0 = arith.constant 0 : i32
    %2 = arith.cmpi ne, %1, %c0_i32_0 : i32
    scf.if %2 {
      %cst_15 = arith.constant 0.000000e+00 : f32
      %26 = vector.broadcast %cst_15 : f32 to vector<9x1xf32>
      %c0_16 = arith.constant 0 : index
      %c0_17 = arith.constant 0 : index
      %27 = vector.load %arg4[%c0_16, %c0_17] : memref<9x1xf32, #tpu.memory_space<vmem>>, vector<9x1xf32>
      tpu.vector_store %arg4[%c0_16, %c0_17], %26 {strides = array<i32>} : memref<9x1xf32, #tpu.memory_space<vmem>>, vector<9x1xf32>,
      %cst_18 = arith.constant 0.000000e+00 : f32
      %28 = vector.broadcast %cst_18 : f32 to vector<9x1xf32>
      %c0_19 = arith.constant 0 : index
      %c0_20 = arith.constant 0 : index
      %29 = vector.load %arg5[%c0_19, %c0_20] : memref<9x1xf32, #tpu.memory_space<vmem>>, vector<9x1xf32>
      tpu.vector_store %arg5[%c0_19, %c0_20], %28 {strides = array<i32>} : memref<9x1xf32, #tpu.memory_space<vmem>>, vector<9x1xf32>,
    } else {
    }
    %c0 = arith.constant 0 : index
    %c0_1 = arith.constant 0 : index
    %3 = vector.load %arg1[%c0, %c0_1] : memref<9x32xf32, #tpu.memory_space<vmem>>, vector<9x32xf32>
    %4 = vector.extract_strided_slice %3 {offsets = [0, 0], sizes = [1, 32], strides = [1, 1]} : vector<9x32xf32> to vector<1x32xf32>
    %5 = vector.broadcast %4 : vector<1x32xf32> to vector<9x32xf32>
    %6 = arith.subf %3, %5 : vector<9x32xf32>
    %c0_2 = arith.constant 0 : index
    %c0_3 = arith.constant 0 : index
    %7 = vector.load %arg4[%c0_2, %c0_3] : memref<9x1xf32, #tpu.memory_space<vmem>>, vector<9x1xf32>
    %8 = arith.mulf %6, %6 : vector<9x32xf32>
    %cst = arith.constant dense<0.000000e+00> : vector<9xf32>
    %9 = vector.multi_reduction <add>, %8, %cst [1] : vector<9x32xf32> to vector<9xf32>
    %10 = vector.shape_cast %9 : vector<9xf32> to vector<9x1xf32>
    %11 = arith.addf %7, %10 : vector<9x1xf32>
    %c0_4 = arith.constant 0 : index
    %c0_5 = arith.constant 0 : index
    %12 = vector.load %arg4[%c0_4, %c0_5] : memref<9x1xf32, #tpu.memory_space<vmem>>, vector<9x1xf32>
    tpu.vector_store %arg4[%c0_4, %c0_5], %11 {strides = array<i32>} : memref<9x1xf32, #tpu.memory_space<vmem>>, vector<9x1xf32>,
    %c0_6 = arith.constant 0 : index
    %c0_7 = arith.constant 0 : index
    %13 = vector.load %arg2[%c0_6, %c0_7] : memref<9x16xf32, #tpu.memory_space<vmem>>, vector<9x16xf32>
    %14 = vector.extract_strided_slice %13 {offsets = [0, 0], sizes = [1, 16], strides = [1, 1]} : vector<9x16xf32> to vector<1x16xf32>
    %15 = vector.broadcast %14 : vector<1x16xf32> to vector<9x16xf32>
    %16 = arith.subf %13, %15 : vector<9x16xf32>
    %c0_8 = arith.constant 0 : index
    %c0_9 = arith.constant 0 : index
    %17 = vector.load %arg5[%c0_8, %c0_9] : memref<9x1xf32, #tpu.memory_space<vmem>>, vector<9x1xf32>
    %18 = arith.mulf %16, %16 : vector<9x16xf32>
    %cst_10 = arith.constant dense<0.000000e+00> : vector<9xf32>
    %19 = vector.multi_reduction <add>, %18, %cst_10 [1] : vector<9x16xf32> to vector<9xf32>
    %20 = vector.shape_cast %19 : vector<9xf32> to vector<9x1xf32>
    %21 = arith.addf %17, %20 : vector<9x1xf32>
    %c0_11 = arith.constant 0 : index
    %c0_12 = arith.constant 0 : index
    %22 = vector.load %arg5[%c0_11, %c0_12] : memref<9x1xf32, #tpu.memory_space<vmem>>, vector<9x1xf32>
    tpu.vector_store %arg5[%c0_11, %c0_12], %21 {strides = array<i32>} : memref<9x1xf32, #tpu.memory_space<vmem>>, vector<9x1xf32>,
    %c0_i32_13 = arith.constant 0 : i32
    %23 = arith.cmpi eq, %arg0, %c0_i32_13 : i32
    %24 = arith.extui %23 : i1 to i32
    %c0_i32_14 = arith.constant 0 : i32
    %25 = arith.cmpi ne, %24, %c0_i32_14 : i32
    scf.if %25 {
      %c0_15 = arith.constant 0 : index
      %c0_16 = arith.constant 0 : index
      %26 = vector.load %arg4[%c0_15, %c0_16] : memref<9x1xf32, #tpu.memory_space<vmem>>, vector<9x1xf32>
      %cst_17 = arith.constant 3.125000e-06 : f32
      %27 = vector.broadcast %cst_17 : f32 to vector<9x1xf32>
      %28 = arith.addf %26, %27 : vector<9x1xf32>
      %29 = math.sqrt %28 : vector<9x1xf32>
      %cst_18 = arith.constant 9.99999997E-7 : f32
      %30 = vector.broadcast %cst_18 : f32 to vector<9x1xf32>
      %31 = arith.addf %29, %30 : vector<9x1xf32>
      %32 = math.log %31 : vector<9x1xf32>
      %c0_19 = arith.constant 0 : index
      %c0_20 = arith.constant 0 : index
      %33 = vector.load %arg5[%c0_19, %c0_20] : memref<9x1xf32, #tpu.memory_space<vmem>>, vector<9x1xf32>
      %cst_21 = arith.constant 6.250000e-06 : f32
      %34 = vector.broadcast %cst_21 : f32 to vector<9x1xf32>
      %35 = arith.addf %33, %34 : vector<9x1xf32>
      %36 = math.sqrt %35 : vector<9x1xf32>
      %cst_22 = arith.constant 9.99999997E-7 : f32
      %37 = vector.broadcast %cst_22 : f32 to vector<9x1xf32>
      %38 = arith.addf %36, %37 : vector<9x1xf32>
      %39 = math.log %38 : vector<9x1xf32>
      %40 = arith.subf %32, %39 : vector<9x1xf32>
      %41 = tpu.iota {dimensions = array<i32: 0>} : vector<9x1xi32>
      %c1_i32 = arith.constant 1 : i32
      %42 = vector.broadcast %c1_i32 : i32 to vector<9x1xi32>
      %43 = arith.cmpi sge, %41, %42 : vector<9x1xi32>
      %44 = arith.extui %43 : vector<9x1xi1> to vector<9x1xi32>
      %45 = arith.sitofp %44 : vector<9x1xi32> to vector<9x1xf32>
      %46 = arith.mulf %40, %45 : vector<9x1xf32>
      %cst_23 = arith.constant dense<0.000000e+00> : vector<1xf32>
      %47 = vector.multi_reduction <add>, %46, %cst_23 [0] : vector<9x1xf32> to vector<1xf32>
      %48 = vector.shape_cast %47 : vector<1xf32> to vector<1x1xf32>
      %cst_24 = arith.constant 1.250000e-01 : f32
      %49 = vector.broadcast %cst_24 : f32 to vector<1x1xf32>
      %50 = arith.mulf %48, %49 : vector<1x1xf32>
      %51 = vector.broadcast %50 : vector<1x1xf32> to vector<9x1xf32>
      %52 = arith.subf %40, %51 : vector<9x1xf32>
      %53 = arith.mulf %52, %45 : vector<9x1xf32>
      %54 = arith.mulf %53, %53 : vector<9x1xf32>
      %cst_25 = arith.constant dense<0.000000e+00> : vector<1xf32>
      %55 = vector.multi_reduction <add>, %54, %cst_25 [0] : vector<9x1xf32> to vector<1xf32>
      %56 = vector.shape_cast %55 : vector<1xf32> to vector<1x1xf32>
      %cst_26 = arith.constant 0.285714298 : f32
      %57 = vector.broadcast %cst_26 : f32 to vector<1x1xf32>
      %58 = arith.mulf %56, %57 : vector<1x1xf32>
      %c0_27 = arith.constant 0 : index
      %c0_28 = arith.constant 0 : index
      %59 = vector.load %arg3[%c0_27, %c0_28] : memref<1x1xf32, #tpu.memory_space<vmem>>, vector<1x1xf32>
      tpu.vector_store %arg3[%c0_27, %c0_28], %58 {strides = array<i32>} : memref<1x1xf32, #tpu.memory_space<vmem>>, vector<1x1xf32>,
    } else {
    }
    return
  }
  func.func @transform_0(%arg0: i32) -> (i32, i32) {
    %c0_i32 = arith.constant 0 : i32
    %c0_i32_0 = arith.constant 0 : i32
    return %c0_i32, %arg0 : i32, i32
  }
  func.func @transform_1(%arg0: i32) -> (i32, i32) {
    %c0_i32 = arith.constant 0 : i32
    %c0_i32_0 = arith.constant 0 : i32
    return %c0_i32, %arg0 : i32, i32
  }
  func.func @transform_2(%arg0: i32) -> (i32, i32) {
    %c0_i32 = arith.constant 0 : i32
    %c0_i32_0 = arith.constant 0 : i32
    %c0_i32_1 = arith.constant 0 : i32
    return %c0_i32, %c0_i32_0 : i32, i32
  }
}

</mosaic_0001>

<llo_original>
// kernel: tpu_custom_call.1
$region0: #{tpu_custom_call.1}
  #allocation0 [shape = 'u32[]', space=smem, size = 0x4, offset = 0x4, fixed_abs, tag = 'smem constant byte address 0x4 - core index']
  #allocation1 [shape = 'u32[144,128]{1,0:T(1,128)}', space=vmem, size = 0x12000, scoped, tag = 'internal scratch']
  #allocation2 [shape = 'f32[9,1]{1,0:T(8,128)}', space=vmem, size = 0x2000, scoped, tag = 'scratch operand']
  #allocation3 [shape = 'f32[9,1]{1,0:T(8,128)}', space=vmem, size = 0x2000, scoped, tag = 'scratch operand']
  %s0 = inlined_call_operand.hbm [shape: f32[9,32], index: 0, kind: input, shape index: {}]
  %s1 = inlined_call_operand.hbm [shape: f32[9,16], index: 1, kind: input, shape index: {}]
  %s2 = inlined_call_operand.hbm [shape: f32[1,1], index: 2, kind: output, shape index: {}]
  %s3 = sld [smem:[#allocation0]]
  $region34: #{tpu_custom_call.1} parent=0
    _
  %s5 = ssub.s32 1, %s3
  %s6 = scalar_select 0, %s5, %s3
  $region1: #{tpu_custom_call.1} parent=0
    #allocation4 [shape = 'u8[8192]{0}', space=vmem, size = 0x2000, scoped, tag = 'input window, operand 0, single buffered']
    #allocation5 [shape = 's32[1]{0}', space=sflag, size = 0x4, scoped, tag = 'scoped memory for tpu_custom_call.1']
    #allocation6 [shape = 's32[1]{0}', space=sflag, size = 0x4, scoped, tag = 'scoped memory for tpu_custom_call.1']
    #allocation7 [shape = 'u8[8192]{0}', space=vmem, size = 0x2000, scoped, tag = 'input window, operand 1, single buffered']
    #allocation8 [shape = 's32[1]{0}', space=sflag, size = 0x4, scoped, tag = 'scoped memory for tpu_custom_call.1']
    #allocation9 [shape = 'u8[512]{0}', space=vmem, size = 0x400, scoped, tag = 'output window, operand 0, single buffered']
    %7 = vsyncpa [#allocation5], 0
    %8 = vsyncpa [#allocation8], 0
    %9 = vsyncpa [#allocation6], 0
    // Predicated region
    $region2: #{tpu_custom_call.1} parent=1 // pred_check
      _
    $region3: #{tpu_custom_call.1} parent=1 // pred_check_branch
      %11 = sbr.rel (0) target = $region5
    $region4: #{tpu_custom_call.1} parent=1 // pred_region
      %s13 = ssub.s32 256, 256
      %14 = vsyncadd [#allocation5], %s13
      %s15 = sshll.u32 [#allocation4], 4
      %s16 = int_to_ptr.vmem [resolvable:$true] %s15
      %21 = dma.hbm_to_vmem [thread:$0]  %s0, 256, %s16, [#allocation5], 128, 128, 8
    $region5: #{tpu_custom_call.1} parent=1 // pred_fallthru
      _
    // Predicated region
    $region6: #{tpu_custom_call.1} parent=1 // pred_check
      _
    $region7: #{tpu_custom_call.1} parent=1 // pred_check_branch
      %23 = sbr.rel (0) target = $region9
    $region8: #{tpu_custom_call.1} parent=1 // pred_region
      %s25 = ssub.s32 256, 256
      %26 = vsyncadd [#allocation8], %s25
      %s27 = sshll.u32 [#allocation7], 4
      %s28 = int_to_ptr.vmem [resolvable:$true] %s27
      %33 = dma.hbm_to_vmem [thread:$0]  %s1, 256, %s28, [#allocation8], 128, 128, 8
    $region9: #{tpu_custom_call.1} parent=1 // pred_fallthru
      _
    // Predicated region
    $region10: #{tpu_custom_call.1} parent=1 // pred_check
      _
    $region11: #{tpu_custom_call.1} parent=1 // pred_check_branch
      %35 = sbr.rel (0) target = $region13
    $region12: #{tpu_custom_call.1} parent=1 // pred_region
      %36 = dma.done [#allocation5], 256
    $region13: #{tpu_custom_call.1} parent=1 // pred_fallthru
      _
    // Predicated region
    $region14: #{tpu_custom_call.1} parent=1 // pred_check
      _
    $region15: #{tpu_custom_call.1} parent=1 // pred_check_branch
      %38 = sbr.rel (0) target = $region17
    $region16: #{tpu_custom_call.1} parent=1 // pred_region
      %39 = dma.done [#allocation8], 256
    $region17: #{tpu_custom_call.1} parent=1 // pred_fallthru
      _
    %p40 = scmp.eq.s32.totalorder 0, 0
    // Predicated region
    $region18: #{tpu_custom_call.1} parent=1 // pred_check
      %p41 = pneg %p40
    $region19: #{tpu_custom_call.1} parent=1 // pred_check_branch
      %43 = sbr.rel (%p41) target = $region21
    $region20: #{tpu_custom_call.1} parent=1 // pred_region
      %vm44 = vcmask 7168
      %45 = vst.msk [vmem:[#allocation2] sm:$0xff] %vm44, 0.0
      %vm46 = vcmask 0
      %47 = vst.msk [vmem:[#allocation2 + $0x8] sm:$0x1] %vm46, 0.0
      %48 = vst.msk [vmem:[#allocation3] sm:$0xff] %vm44, 0.0
      %49 = vst.msk [vmem:[#allocation3 + $0x8] sm:$0x1] %vm46, 0.0
    $region21: #{tpu_custom_call.1} parent=1 // pred_fallthru
      _
    %v50 = vld [vmem:[#allocation4] sm:$0xff]
    %v51 = vld [vmem:[#allocation4 + $0x8] sm:$0x1]
    %v52 = vlaneseq
    %v53 = vshrl.u32 %v52, 7
    %v54 = vsub.s32 0, %v53
    %v55 = vrot.slane %v50, %v54
    %v56 = vsub.f32 %v50, %v55
    %v57 = vsub.f32 %v51, %v55
    %v58 = vld [vmem:[#allocation2] sm:$0xff]
    %v59 = vld [vmem:[#allocation2 + $0x8] sm:$0x1]
    %v60 = vmul.f32 %v56, %v56
    %v61 = vmul.f32 %v57, %v57
    %vm62 = vcmask 261120
    %v63 = vsel %vm62, %v60, 0.0
    %64 = vadd.xlane.f32.xlu0 %v63
    %v65 = vpop.xlane.xlu0 %64
    %vm66 = vcmask 253952
    %v67 = vsel %vm66, %v61, 0.0
    %68 = vadd.xlane.f32.xlu0 %v67
    %v69 = vpop.xlane.xlu0 %68
    %v70 = vadd.f32 %v58, %v65
    %v71 = vadd.f32 %v59, %v69
    %vm72 = vcmask 7168
    %73 = vst.msk [vmem:[#allocation2] sm:$0xff] %vm72, %v70
    %vm74 = vcmask 0
    %75 = vst.msk [vmem:[#allocation2 + $0x8] sm:$0x1] %vm74, %v71
    %v76 = vld [vmem:[#allocation7] sm:$0xff]
    %v77 = vld [vmem:[#allocation7 + $0x8] sm:$0x1]
    %v78 = vlaneseq
    %v79 = vshrl.u32 %v78, 7
    %v80 = vsub.s32 0, %v79
    %v81 = vrot.slane %v76, %v80
    %v82 = vsub.f32 %v76, %v81
    %v83 = vsub.f32 %v77, %v81
    %v84 = vld [vmem:[#allocation3] sm:$0xff]
    %v85 = vld [vmem:[#allocation3 + $0x8] sm:$0x1]
    %v86 = vmul.f32 %v82, %v82
    %v87 = vmul.f32 %v83, %v83
    %vm88 = vcmask 130048
    %v89 = vsel %vm88, %v86, 0.0
    %90 = vadd.xlane.f32.xlu0 %v89
    %v91 = vpop.xlane.xlu0 %90
    %vm92 = vcmask 122880
    %v93 = vsel %vm92, %v87, 0.0
    %94 = vadd.xlane.f32.xlu0 %v93
    %v95 = vpop.xlane.xlu0 %94
    %v96 = vadd.f32 %v84, %v91
    %v97 = vadd.f32 %v85, %v95
    %98 = vst.msk [vmem:[#allocation3] sm:$0xff] %vm72, %v96
    %99 = vst.msk [vmem:[#allocation3 + $0x8] sm:$0x1] %vm74, %v97
    // Predicated region
    $region22: #{tpu_custom_call.1} parent=1 // pred_check
      %p100 = pneg %p40
    $region23: #{tpu_custom_call.1} parent=1 // pred_check_branch
      %102 = sbr.rel (%p100) target = $region25
    $region24: #{tpu_custom_call.1} parent=1 // pred_region
      %v103 = vld [vmem:[#allocation2] sm:$0xff]
      %v104 = vld [vmem:[#allocation2 + $0x8] sm:$0x1]
      %v105 = vadd.f32 %v103, 3.125e-06
      %v106 = vadd.f32 %v104, 3.125e-06
      %v107 = vrsqrt.pop %v105
      %v108 = vmul.f32 %v105, %v107
      %vm109 = vcmp.eq.f32.partialorder %v105, inf
      %v110 = vsel %vm109, %v105, %v108
      %vm111 = vcmp.eq.f32.partialorder %v105, 0.0
      %v112 = vand.u32 %v105, 2147483648
      %v113 = vsel %vm111, %v112, %v110
      %v114 = vrsqrt.pop %v106
      %v115 = vmul.f32 %v106, %v114
      %vm116 = vcmp.eq.f32.partialorder %v106, inf
      %v117 = vsel %vm116, %v106, %v115
      %vm118 = vcmp.eq.f32.partialorder %v106, 0.0
      %v119 = vand.u32 %v106, 2147483648
      %v120 = vsel %vm118, %v119, %v117
      %v121 = vadd.f32 %v113, 1e-06
      %v122 = vadd.f32 %v120, 1e-06
      %v123 = vlog2.pop %v121
      %v124 = vmul.f32 %v123, 0.6931472
      %v125 = vlog2.pop %v122
      %v126 = vmul.f32 %v125, 0.6931472
      %v127 = vld [vmem:[#allocation3] sm:$0xff]
      %v128 = vld [vmem:[#allocation3 + $0x8] sm:$0x1]
      %v129 = vadd.f32 %v127, 6.25e-06
      %v130 = vadd.f32 %v128, 6.25e-06
      %v131 = vrsqrt.pop %v129
      %v132 = vmul.f32 %v129, %v131
      %vm133 = vcmp.eq.f32.partialorder %v129, inf
      %v134 = vsel %vm133, %v129, %v132
      %vm135 = vcmp.eq.f32.partialorder %v129, 0.0
      %v136 = vand.u32 %v129, 2147483648
      %v137 = vsel %vm135, %v136, %v134
      %v138 = vrsqrt.pop %v130
      %v139 = vmul.f32 %v130, %v138
      %vm140 = vcmp.eq.f32.partialorder %v130, inf
      %v141 = vsel %vm140, %v130, %v139
      %vm142 = vcmp.eq.f32.partialorder %v130, 0.0
      %v143 = vand.u32 %v130, 2147483648
      %v144 = vsel %vm142, %v143, %v141
      %v145 = vadd.f32 %v137, 1e-06
      %v146 = vadd.f32 %v144, 1e-06
      %v147 = vlog2.pop %v145
      %v148 = vmul.f32 %v147, 0.6931472
      %v149 = vlog2.pop %v146
      %v150 = vmul.f32 %v149, 0.6931472
      %v151 = vsub.f32 %v124, %v148
      %v152 = vsub.f32 %v126, %v150
      %v153 = vlaneseq
      %v154 = vshrl.u32 %v153, 7
      %v155 = vadd.s32 %v154, 8
      %vm156 = vcmp.ge.s32.totalorder %v154, 1
      %vm157 = vcmp.ge.s32.totalorder %v155, 1
      %v158 = vsel %vm156, 1, 0
      %v159 = vsel %vm157, 1, 0
      %v160 = vcvt.s32.f32 %v158
      %v161 = vcvt.s32.f32 %v159
      %v162 = vmul.f32 %v151, %v160
      %v163 = vmul.f32 %v152, %v161
      %v164 = vsel %vm72, %v162, 0.0
      %v165 = vsel %vm74, %v163, 0.0
      %v166 = vadd.f32 %v164, %v165
      %v167 = vrot.slane %v166, 4
      %v168 = vadd.f32 %v166, %v167
      %v169 = vrot.slane %v168, 2
      %v170 = vadd.f32 %v168, %v169
      %v171 = vrot.slane %v170, 1
      %v172 = vadd.f32 %v170, %v171
      %v173 = vmul.f32 %v172, 0.125
      %v174 = vsub.f32 %v151, %v173
      %v175 = vsub.f32 %v152, %v173
      %v176 = vmul.f32 %v174, %v160
      %v177 = vmul.f32 %v175, %v161
      %v178 = vmul.f32 %v176, %v176
      %v179 = vmul.f32 %v177, %v177
      %v180 = vsel %vm72, %v178, 0.0
      %v181 = vsel %vm74, %v179, 0.0
      %v182 = vadd.f32 %v180, %v181
      %v183 = vrot.slane %v182, 4
      %v184 = vadd.f32 %v182, %v183
      %v185 = vrot.slane %v184, 2
      %v186 = vadd.f32 %v184, %v185
      %v187 = vrot.slane %v186, 1
      %v188 = vadd.f32 %v186, %v187
      %v189 = vmul.f32 %v188, 0.2857143
      %190 = vst.msk [vmem:[#allocation9] sm:$0x1] %vm74, %v189
    $region25: #{tpu_custom_call.1} parent=1 // pred_fallthru
      _
    // Predicated region
    $region26: #{tpu_custom_call.1} parent=1 // pred_check
      _
    $region27: #{tpu_custom_call.1} parent=1 // pred_check_branch
      %192 = sbr.rel (0) target = $region29
    $region28: #{tpu_custom_call.1} parent=1 // pred_region
      %s194 = ssub.s32 16, 16
      %195 = vsyncadd [#allocation6], %s194
      %s197 = sshll.u32 [#allocation9], 4
      %s198 = int_to_ptr.vmem [resolvable:$true] %s197
      %200 = dma.vmem_to_hbm [thread:$0]  %s198, 16, %s2, [#allocation6]
    $region29: #{tpu_custom_call.1} parent=1 // pred_fallthru
      _
    // Predicated region
    $region30: #{tpu_custom_call.1} parent=1 // pred_check
      _
    $region31: #{tpu_custom_call.1} parent=1 // pred_check_branch
      %202 = sbr.rel (0) target = $region33
    $region32: #{tpu_custom_call.1} parent=1 // pred_region
      %203 = dma.done [#allocation6], 16
    $region33: #{tpu_custom_call.1} parent=1 // pred_fallthru
      _
    %204 = vsyncpa [#allocation5], 1
    %205 = vsyncpa [#allocation8], 1
    %206 = vsyncpa [#allocation6], 1

</llo_original>
